<compile_context>
chip_gen: v6e
topology: v6e:2x2x1
jax: 0.10.0
libtpu: 0.0.40
codegen_flags: <defaults>
</compile_context>

<pallas_src>
import functools
import math

import jax
import jax.numpy as jnp
from jax.experimental import pallas as pl
from jax.experimental.pallas import tpu as pltpu


def _round_up(n, m):
    return ((n + m - 1) // m) * m


def _min_sublane(dtype):
    # Minimum legal second-to-last block dim (sublane packing) per element width.
    return {4: 8, 2: 16, 1: 32}.get(jnp.dtype(dtype).itemsize, 8)


@functools.lru_cache(maxsize=None)
def _vmem_limit_bytes():
    """Generation-aware scoped-VMEM limit: 3/4 of physical per-core VMEM
    (96 MiB on v5e/v6e, 48 MiB on v7x); conservative 48 MiB fallback."""
    cap = None
    try:
        cap = getattr(pltpu.get_tpu_info(), "vmem_capacity_bytes", None)
    except Exception:
        cap = None
    if not cap:
        cap = 64 * 1024 * 1024
    return int(cap) * 3 // 4


@functools.lru_cache(maxsize=None)
def _single_buffer_supported():
    """Probe whether pipeline_mode=pl.Buffered(1) on a constant-index block lowers,
    compiles and runs correctly on this backend.  Falls back cleanly if not."""
    if not hasattr(pl, "Buffered"):
        return False

    def k(a_ref, w_ref, o_ref):
        o_ref[...] = a_ref[...] + w_ref[...]

    try:
        with jax.ensure_compile_time_eval():
            a = jnp.arange(16 * 128, dtype=jnp.float32).reshape(16, 128)
            w = jnp.ones((8, 128), jnp.float32)
            out = pl.pallas_call(
                k,
                out_shape=jax.ShapeDtypeStruct((16, 128), jnp.float32),
                grid=(2,),
                in_specs=[
                    pl.BlockSpec((8, 128), lambda i: (i, 0)),
                    pl.BlockSpec((8, 128), lambda i: (0, 0),
                                 pipeline_mode=pl.Buffered(1)),
                ],
                out_specs=pl.BlockSpec((8, 128), lambda i: (i, 0)),
            )(a, w)
            return bool(jnp.allclose(out, a + 1.0))
    except Exception:
        return False


def _pick_tm(M, E, D, x_dtype, w_dtype, out_dtype, vmem_budget, weight_buffers):
    """Largest row tile that fits the VMEM budget, capped at 1024 rows and capped so the
    M grid keeps >= 2 steps (so v7x's two TensorCores both get work)."""
    sub = _min_sublane(x_dtype)
    Ep = _round_up(max(E, 1), 128)
    Dp = _round_up(max(D, 1), 128)
    w_item = jnp.dtype(w_dtype).itemsize
    # Resident weights + biases (1 copy if single-buffered, 2 if double-buffered).
    w_bytes = weight_buffers * ((Ep * Dp + Dp * Ep) + (Dp + Ep)) * w_item
    per_row = (
        2 * Ep * jnp.dtype(x_dtype).itemsize      # double-buffered x tile
        + 2 * Ep * jnp.dtype(out_dtype).itemsize  # double-buffered out tile
        + (Dp + Ep) * 4                           # f32 intermediate + pre-cast result
    )
    avail = max(vmem_budget - w_bytes, per_row * sub)
    tm = avail // per_row
    tm = min(int(tm), 1024, _round_up(max(pl.cdiv(M, 2), sub), sub))
    tm = max(sub, (int(tm) // sub) * sub)
    return int(tm)


def adapter_kernel(x_ref, wd_ref, bd_ref, wu_ref, bu_ref, scale_ref, o_ref):
    """Fused: relu(x @ Wd + bd) @ Wu + bu, scaled by a learnable scalar."""
    x = x_ref[...]                                                         # (tm, E), native dtype
    # Down projection on the MXU; accumulate in f32.
    down = jnp.dot(x, wd_ref[...], preferred_element_type=jnp.float32)     # (tm, D)
    down = jnp.maximum(down + bd_ref[...].astype(jnp.float32), 0.0)        # bias + ReLU
    # TODO(synk): dropout with p>0 (training mode) not implemented; module default p=0.0.
    # Up projection: cast intermediate to the weight dtype (no-op for f32, unlocks
    # bf16 MXU rate when weights are bf16); accumulate in f32.
    up = jnp.dot(down.astype(wu_ref.dtype), wu_ref[...],
                 preferred_element_type=jnp.float32)                        # (tm, E)
    up = up + bu_ref[...].astype(jnp.float32)
    o_ref[...] = (up * scale_ref[0, 0]).astype(o_ref.dtype)


def adapter_forward(x, w_down, b_down, w_up, b_up, scale, *,
                    tm=None, single_buffer_weights=None, interpret=False):
    """x: (B, S, E). Weights: w_down (E, D), w_up (D, E). Returns (B, S, E)."""
    B, S, E = x.shape
    D = w_down.shape[1]
    M = B * S

    if single_buffer_weights is None:
        single_buffer_weights = _single_buffer_supported()

    vmem_limit = _vmem_limit_bytes()
    if tm is None:
        tm = _pick_tm(M, E, D, x.dtype, w_down.dtype, x.dtype,
                      vmem_budget=int(vmem_limit * 0.8),
                      weight_buffers=1 if single_buffer_weights else 2)
    sub = _min_sublane(x.dtype)
    tm = max(sub, (int(tm) // sub) * sub)

    # No activation padding: full-E blocks (exempt from the 128 rule) + cdiv grid over M
    # (Pallas masks the partial last block; padded rows never reach HBM).
    x2d = x.reshape(M, E)
    bd = b_down.reshape(1, D)
    bu = b_up.reshape(1, E)
    sc = jnp.asarray(scale, jnp.float32).reshape(1, 1)

    grid = (pl.cdiv(M, tm),)

    # TODO(synk): if the adapter weights ever grow past ~40% of per-core VMEM
    # (2*E*D*itemsize), add a second "arbitrary" grid axis over D with an f32 accumulator
    # instead of keeping both matrices fully resident.
    def const_spec(shape):
        if single_buffer_weights:
            return pl.BlockSpec(shape, lambda i: (0, 0), pipeline_mode=pl.Buffered(1))
        return pl.BlockSpec(shape, lambda i: (0, 0))

    x_item = jnp.dtype(x.dtype).itemsize
    w_item = jnp.dtype(w_down.dtype).itemsize
    cost = pl.CostEstimate(
        flops=4 * M * E * D,            # two matmuls, 2*M*E*D flops each
        transcendentals=0,
        bytes_accessed=int(2 * M * E * x_item + (2 * E * D + D + E) * w_item + 4),
    )

    out2d = pl.pallas_call(
        adapter_kernel,
        out_shape=jax.ShapeDtypeStruct((M, E), x.dtype),
        grid_spec=pltpu.PrefetchScalarGridSpec(
            num_scalar_prefetch=0,
            grid=grid,
            in_specs=[
                pl.BlockSpec((tm, E), lambda i: (i, 0)),            # x row tile (full-E lanes)
                const_spec((E, D)),                                 # W_down (resident)
                const_spec((1, D)),                                 # b_down
                const_spec((D, E)),                                 # W_up (resident)
                const_spec((1, E)),                                 # b_up
                pl.BlockSpec(memory_space=pltpu.MemorySpace.SMEM),  # scale scalar
            ],
            out_specs=pl.BlockSpec((tm, E), lambda i: (i, 0)),
        ),
        compiler_params=pltpu.CompilerParams(
            dimension_semantics=("parallel",),
            vmem_limit_bytes=int(vmem_limit),
        ),
        cost_estimate=cost,
        interpret=interpret,
    )(x2d, w_down, bd, w_up, bu, sc)

    return out2d.reshape(B, S, E)


def adapter_reference(x, w_down, b_down, w_up, b_up, scale):
    down = jnp.maximum(x @ w_down + b_down, 0.0)
    return (down @ w_up + b_up) * scale


def make_params(key, n_embed, down_size, faithful_init=True):
    """Parameters matching Adapter.__init__ shapes.

    faithful_init=True replicates the PyTorch init:
      down_proj.weight ~ kaiming_uniform(a=sqrt(5)) -> U(-1/sqrt(E), 1/sqrt(E)),
      up_proj.weight = 0, biases = 0, scale = 1.0.
    faithful_init=False uses small random up_proj weights/biases so the full fused
    datapath is exercised numerically (still deterministic via the key).
    """
    k1, k2, k3, _ = jax.random.split(key, 4)
    bound = 1.0 / math.sqrt(n_embed)
    # Stored as (in, out) = transpose of PyTorch's (out, in); distribution unchanged.
    w_down = jax.random.uniform(k1, (n_embed, down_size), jnp.float32, -bound, bound)
    b_down = jnp.zeros((down_size,), jnp.float32)
    if faithful_init:
        w_up = jnp.zeros((down_size, n_embed), jnp.float32)
        b_up = jnp.zeros((n_embed,), jnp.float32)
    else:
        w_up = 0.02 * jax.random.normal(k2, (down_size, n_embed), jnp.float32)
        b_up = 0.02 * jax.random.normal(k3, (n_embed,), jnp.float32)
    scale = jnp.ones((1,), jnp.float32)  # learnable_scalar init
    return w_down, b_down, w_up, b_up, scale


if __name__ == "__main__":
    # TODO(synk): adapter_layernorm_option='in'/'out' (LayerNorm branch) not implemented;
    # module default is 'none'.
    B, S, E, D = 2, 8, 32, 16  # batch, seq, n_embed, down_size
    key = jax.random.PRNGKey(0)
    kx, kp = jax.random.split(key)
    x = jax.random.normal(kx, (B, S, E), jnp.float32)

    sbuf = _single_buffer_supported()  # probe once, eagerly (outside jit)
    fwd = jax.jit(functools.partial(adapter_forward, single_buffer_weights=sbuf))

    # 1) Faithful-to-__init__ parameters (up_proj zero-init -> output is zeros).
    params = make_params(kp, E, D, faithful_init=True)
    out = fwd(x, *params)
    jax.block_until_ready(out)
    ref = adapter_reference(x, *params)
    assert out.shape == (B, S, E)
    assert jnp.allclose(out, ref, atol=1e-5, rtol=1e-5)

    # 2) Non-degenerate (deterministic) weights to numerically exercise the full fused
    #    path (down matmul -> ReLU -> up matmul -> scale), with scale = 1.5.
    params2 = make_params(kp, E, D, faithful_init=False)
    params2 = params2[:4] + (jnp.array([1.5], jnp.float32),)
    out2 = fwd(x, *params2)
    jax.block_until_ready(out2)
    ref2 = adapter_reference(x, *params2)
    assert jnp.allclose(out2, ref2, atol=1e-4, rtol=1e-4)

    print("KERNEL_OK")
</pallas_src>

<mosaic_0001>
module attributes {stable_mosaic.version = 11 : i64} {
  func.func @k(%arg0: i32, %arg1: memref<8x128xf32, #tpu.memory_space<vmem>>, %arg2: memref<8x128xf32, #tpu.memory_space<vmem>>, %arg3: memref<8x128xf32, #tpu.memory_space<vmem>>) attributes {dimension_semantics = [#tpu.dimension_semantics<arbitrary>], iteration_bounds = array<i64: 2>, scalar_prefetch = 0 : i64, scratch_operands = 0 : i64, tpu.core_type = #tpu.core_type<tc>, window_params = [{transform_indices = @transform_0, window_bounds = array<i64: 8, 128>}, {pipeline_mode = #tpu.pipeline_mode<synchronous>, transform_indices = @transform_1, window_bounds = array<i64: 8, 128>}, {transform_indices = @transform_2, window_bounds = array<i64: 8, 128>}]} {
    %c0 = arith.constant 0 : index
    %c0_0 = arith.constant 0 : index
    %0 = vector.load %arg1[%c0, %c0_0] : memref<8x128xf32, #tpu.memory_space<vmem>>, vector<8x128xf32>
    %c0_1 = arith.constant 0 : index
    %c0_2 = arith.constant 0 : index
    %1 = vector.load %arg2[%c0_1, %c0_2] : memref<8x128xf32, #tpu.memory_space<vmem>>, vector<8x128xf32>
    %2 = arith.addf %0, %1 : vector<8x128xf32>
    %c0_3 = arith.constant 0 : index
    %c0_4 = arith.constant 0 : index
    %3 = vector.load %arg3[%c0_3, %c0_4] : memref<8x128xf32, #tpu.memory_space<vmem>>, vector<8x128xf32>
    tpu.vector_store %arg3[%c0_3, %c0_4], %2 {strides = array<i32>} : memref<8x128xf32, #tpu.memory_space<vmem>>, vector<8x128xf32>,
    return
  }
  func.func @transform_0(%arg0: i32) -> (i32, i32) {
    %c0_i32 = arith.constant 0 : i32
    %c0_i32_0 = arith.constant 0 : i32
    return %arg0, %c0_i32 : i32, i32
  }
  func.func @transform_1(%arg0: i32) -> (i32, i32) {
    %c0_i32 = arith.constant 0 : i32
    %c0_i32_0 = arith.constant 0 : i32
    %c0_i32_1 = arith.constant 0 : i32
    return %c0_i32, %c0_i32_0 : i32, i32
  }
  func.func @transform_2(%arg0: i32) -> (i32, i32) {
    %c0_i32 = arith.constant 0 : i32
    %c0_i32_0 = arith.constant 0 : i32
    return %arg0, %c0_i32 : i32, i32
  }
}

module attributes {stable_mosaic.version = 11 : i64} {
  func.func @adapter_kernel(%arg0: i32, %arg1: memref<8x32xf32, #tpu.memory_space<vmem>>, %arg2: memref<32x16xf32, #tpu.memory_space<vmem>>, %arg3: memref<1x16xf32, #tpu.memory_space<vmem>>, %arg4: memref<16x32xf32, #tpu.memory_space<vmem>>, %arg5: memref<1x32xf32, #tpu.memory_space<vmem>>, %arg6: memref<1x1xf32, #tpu.memory_space<smem>>, %arg7: memref<8x32xf32, #tpu.memory_space<vmem>>) attributes {dimension_semantics = [#tpu.dimension_semantics<parallel>], iteration_bounds = array<i64: 2>, scalar_prefetch = 0 : i64, scratch_operands = 0 : i64, tpu.core_type = #tpu.core_type<tc>, window_params = [{transform_indices = @transform_0, window_bounds = array<i64: 8, 32>}, {pipeline_mode = #tpu.pipeline_mode<synchronous>, transform_indices = @transform_1, window_bounds = array<i64: 32, 16>}, {pipeline_mode = #tpu.pipeline_mode<synchronous>, transform_indices = @transform_2, window_bounds = array<i64: 1, 16>}, {pipeline_mode = #tpu.pipeline_mode<synchronous>, transform_indices = @transform_3, window_bounds = array<i64: 16, 32>}, {pipeline_mode = #tpu.pipeline_mode<synchronous>, transform_indices = @transform_4, window_bounds = array<i64: 1, 32>}, {transform_indices = @transform_5, window_bounds = array<i64: 1, 1>}, {transform_indices = @transform_6, window_bounds = array<i64: 8, 32>}]} {
    %c0 = arith.constant 0 : index
    %c0_0 = arith.constant 0 : index
    %0 = vector.load %arg1[%c0, %c0_0] : memref<8x32xf32, #tpu.memory_space<vmem>>, vector<8x32xf32>
    %c0_1 = arith.constant 0 : index
    %c0_2 = arith.constant 0 : index
    %1 = vector.load %arg2[%c0_1, %c0_2] : memref<32x16xf32, #tpu.memory_space<vmem>>, vector<32x16xf32>
    %cst = arith.constant dense<0.000000e+00> : vector<8x16xf32>
    %2 = tpu.matmul %0, %1, %cst {dimension_numbers = #tpu.dot_dimension_numbers<[1], [0], [0], [1], [0, 0, 1, 1], [], []>} : vector<8x32xf32>, vector<32x16xf32>, vector<8x16xf32> -> vector<8x16xf32>
    %c0_3 = arith.constant 0 : index
    %c0_4 = arith.constant 0 : index
    %3 = vector.load %arg3[%c0_3, %c0_4] : memref<1x16xf32, #tpu.memory_space<vmem>>, vector<1x16xf32>
    %4 = vector.broadcast %3 : vector<1x16xf32> to vector<8x16xf32>
    %5 = arith.addf %2, %4 : vector<8x16xf32>
    %cst_5 = arith.constant 0.000000e+00 : f32
    %6 = vector.broadcast %cst_5 : f32 to vector<8x16xf32>
    %7 = arith.maximumf %5, %6 : vector<8x16xf32>
    %c0_6 = arith.constant 0 : index
    %c0_7 = arith.constant 0 : index
    %8 = vector.load %arg4[%c0_6, %c0_7] : memref<16x32xf32, #tpu.memory_space<vmem>>, vector<16x32xf32>
    %cst_8 = arith.constant dense<0.000000e+00> : vector<8x32xf32>
    %9 = tpu.matmul %7, %8, %cst_8 {dimension_numbers = #tpu.dot_dimension_numbers<[1], [0], [0], [1], [0, 0, 1, 1], [], []>} : vector<8x16xf32>, vector<16x32xf32>, vector<8x32xf32> -> vector<8x32xf32>
    %c0_9 = arith.constant 0 : index
    %c0_10 = arith.constant 0 : index
    %10 = vector.load %arg5[%c0_9, %c0_10] : memref<1x32xf32, #tpu.memory_space<vmem>>, vector<1x32xf32>
    %11 = vector.broadcast %10 : vector<1x32xf32> to vector<8x32xf32>
    %12 = arith.addf %9, %11 : vector<8x32xf32>
    %c0_11 = arith.constant 0 : index
    %c0_12 = arith.constant 0 : index
    %13 = memref.load %arg6[%c0_11, %c0_12] : memref<1x1xf32, #tpu.memory_space<smem>>
    %14 = vector.broadcast %13 : f32 to vector<8x32xf32>
    %15 = arith.mulf %12, %14 : vector<8x32xf32>
    %c0_13 = arith.constant 0 : index
    %c0_14 = arith.constant 0 : index
    %16 = vector.load %arg7[%c0_13, %c0_14] : memref<8x32xf32, #tpu.memory_space<vmem>>, vector<8x32xf32>
    tpu.vector_store %arg7[%c0_13, %c0_14], %15 {strides = array<i32>} : memref<8x32xf32, #tpu.memory_space<vmem>>, vector<8x32xf32>,
    return
  }
  func.func @transform_0(%arg0: i32) -> (i32, i32) {
    %c0_i32 = arith.constant 0 : i32
    %c0_i32_0 = arith.constant 0 : i32
    return %arg0, %c0_i32 : i32, i32
  }
  func.func @transform_1(%arg0: i32) -> (i32, i32) {
    %c0_i32 = arith.constant 0 : i32
    %c0_i32_0 = arith.constant 0 : i32
    %c0_i32_1 = arith.constant 0 : i32
    return %c0_i32, %c0_i32_0 : i32, i32
  }
  func.func @transform_2(%arg0: i32) -> (i32, i32) {
    %c0_i32 = arith.constant 0 : i32
    %c0_i32_0 = arith.constant 0 : i32
    %c0_i32_1 = arith.constant 0 : i32
    return %c0_i32, %c0_i32_0 : i32, i32
  }
  func.func @transform_3(%arg0: i32) -> (i32, i32) {
    %c0_i32 = arith.constant 0 : i32
    %c0_i32_0 = arith.constant 0 : i32
    %c0_i32_1 = arith.constant 0 : i32
    return %c0_i32, %c0_i32_0 : i32, i32
  }
  func.func @transform_4(%arg0: i32) -> (i32, i32) {
    %c0_i32 = arith.constant 0 : i32
    %c0_i32_0 = arith.constant 0 : i32
    %c0_i32_1 = arith.constant 0 : i32
    return %c0_i32, %c0_i32_0 : i32, i32
  }
  func.func @transform_5(%arg0: i32) -> (i32, i32) {
    %c0_i32 = arith.constant 0 : i32
    %c0_i32_0 = arith.constant 0 : i32
    %c0_i32_1 = arith.constant 0 : i32
    return %c0_i32, %c0_i32_0 : i32, i32
  }
  func.func @transform_6(%arg0: i32) -> (i32, i32) {
    %c0_i32 = arith.constant 0 : i32
    %c0_i32_0 = arith.constant 0 : i32
    return %arg0, %c0_i32 : i32, i32
  }
}

</mosaic_0001>

<llo_original>
// kernel: tpu_custom_call.1
$region0: #{tpu_custom_call.1}
  #allocation0 [shape = 'u32[]', space=smem, size = 0x4, offset = 0x4, fixed_abs, tag = 'smem constant byte address 0x4 - core index']
  #allocation1 [shape = 'u32[144,128]{1,0:T(1,128)}', space=vmem, size = 0x12000, scoped, tag = 'internal scratch']
  %s0 = inlined_call_operand.hbm [shape: f32[16,128], index: 0, kind: input, shape index: {}]
  %s1 = inlined_call_operand.hbm [shape: f32[8,128], index: 1, kind: input, shape index: {}]
  %s2 = inlined_call_operand.hbm [shape: f32[16,128], index: 2, kind: output, shape index: {}]
  %s3 = sld [smem:[#allocation0]]
  $region49: #{tpu_custom_call.1} parent=0
    _
  %s5 = ssub.s32 1, %s3
  %s6 = scalar_select 0, %s5, %s3
  $region1: #{tpu_custom_call.1} parent=0
    #allocation2 [shape = 'u8[8192]{0}', space=vmem, size = 0x2000, scoped, tag = 'input window, operand 0']
    #allocation3 [shape = 's32[2]{0}', space=sflag, size = 0x8, scoped, tag = 'scoped memory for tpu_custom_call.1']
    #allocation4 [shape = 's32[2]{0}', space=sflag, size = 0x8, scoped, tag = 'scoped memory for tpu_custom_call.1']
    #allocation5 [shape = 'u8[4096]{0}', space=vmem, size = 0x1000, scoped, tag = 'input window, operand 1, single buffered']
    #allocation6 [shape = 's32[1]{0}', space=sflag, size = 0x4, scoped, tag = 'scoped memory for tpu_custom_call.1']
    #allocation7 [shape = 'u8[8192]{0}', space=vmem, size = 0x2000, scoped, tag = 'output window, operand 0']
    %7 = vsyncpa [#allocation3], 0
    %s8 = scalar_lea.sflag [#allocation3], 1
    %9 = vsyncpa %s8, 0
    %10 = vsyncpa [#allocation6], 0
    %11 = vsyncpa [#allocation4], 0
    %s12 = scalar_lea.sflag [#allocation4], 1
    %13 = vsyncpa %s12, 0
    loop: start=0, step=1, limit=4
    $region2: #{tpu_custom_call.1} parent=1 // loop_pre_header
      _
    $region3: #{tpu_custom_call.1} parent=1 // loop_header
      %s15 = sphi 0, %s19
      %p16 = scmp.ge.s32.totalorder %s15, 4
      %s25 = sphi 0, %s27
      %s28 = sphi 0, %s25
      %s29 = sphi 0, %s28
      %s45 = sphi 0, %s29
      %s49 = sphi 0, %s49
      %s51 = sphi 0, %s49
      %s52 = sphi 0, %s51
      %s66 = sphi 0, %s52
      %s72 = sphi 0, %s74
      %s75 = sphi 0, %s72
      %s76 = sphi 0, %s75
      %s92 = sphi 0, %s76
    $region4: #{tpu_custom_call.1} parent=1 // loop_header_branch
      %18 = sbr.rel (%p16) target = $region8
    $region5: #{tpu_custom_call.1} parent=1 // loop_body
      %s20 = ssub.s32 %s15, 1
      %s21 = ssub.s32 %s15, 2
      %s22 = sadd.s32 %s15, 1
      %s23 = ssub.s32 %s15, %s22
      %p24 = scmp.eq.s32.totalorder %s23, 0
      %s26 = sadd.s32 %s25, 1
      %s27 = scalar_select %p24, %s25, %s26
      %p30 = pneg %p24
      %p31 = scmp.eq.s32.totalorder %s15, 1
      %p32 = por %p30, %p31
      %p33 = scmp.ne.s32.totalorder %s25, %s28
      %p34 = scmp.eq.s32.totalorder %s15, 0
      %p35 = por %p33, %p34
      %p36 = scmp.ne.s32.totalorder %s25, %s28
      %p37 = scmp.eq.s32.totalorder %s20, 1
      %p38 = por %p36, %p37
      %p39 = scmp.ne.s32.totalorder %s28, %s29
      %p40 = scmp.eq.s32.totalorder %s20, 0
      %p41 = por %p39, %p40
      %p42 = scmp.ne.s32.totalorder %s28, %s29
      %p43 = scmp.eq.s32.totalorder %s21, 1
      %p44 = por %p42, %p43
      %p46 = scmp.ne.s32.totalorder %s29, %s45
      %p47 = scmp.eq.s32.totalorder %s21, 0
      %p48 = por %p46, %p47
      %s50 = sadd.s32 %s49, 1
      %p53 = scmp.eq.s32.totalorder %s15, 1
      %p54 = scmp.ne.s32.totalorder %s49, %s51
      %p55 = scmp.eq.s32.totalorder %s15, 0
      %p56 = por %p54, %p55
      %p57 = scmp.ne.s32.totalorder %s49, %s51
      %p58 = scmp.eq.s32.totalorder %s20, 1
      %p59 = por %p57, %p58
      %p60 = scmp.ne.s32.totalorder %s51, %s52
      %p61 = scmp.eq.s32.totalorder %s20, 0
      %p62 = por %p60, %p61
      %p63 = scmp.ne.s32.totalorder %s51, %s52
      %p64 = scmp.eq.s32.totalorder %s21, 1
      %p65 = por %p63, %p64
      %p67 = scmp.ne.s32.totalorder %s52, %s66
      %p68 = scmp.eq.s32.totalorder %s21, 0
      %p69 = por %p67, %p68
      %s70 = ssub.s32 %s15, %s22
      %p71 = scmp.eq.s32.totalorder %s70, 0
      %s73 = sadd.s32 %s72, 1
      %s74 = scalar_select %p71, %s72, %s73
      %p77 = pneg %p71
      %p78 = scmp.eq.s32.totalorder %s15, 1
      %p79 = por %p77, %p78
      %p80 = scmp.ne.s32.totalorder %s72, %s75
      %p81 = scmp.eq.s32.totalorder %s15, 0
      %p82 = por %p80, %p81
      %p83 = scmp.ne.s32.totalorder %s72, %s75
      %p84 = scmp.eq.s32.totalorder %s20, 1
      %p85 = por %p83, %p84
      %p86 = scmp.ne.s32.totalorder %s75, %s76
      %p87 = scmp.eq.s32.totalorder %s20, 0
      %p88 = por %p86, %p87
      %p89 = scmp.ne.s32.totalorder %s75, %s76
      %p90 = scmp.eq.s32.totalorder %s21, 1
      %p91 = por %p89, %p90
      %p93 = scmp.ne.s32.totalorder %s76, %s92
      %p94 = scmp.eq.s32.totalorder %s21, 0
      %p95 = por %p93, %p94
      %p96 = scmp.le.s32.totalorder 1, %s15
      %p97 = scmp.lt.s32.totalorder %s15, 3
      %p98 = pnand %p96, %p97
      %p99 = pneg %p98
      // Predicated region
      $region9: #{tpu_custom_call.1} parent=5 // pred_check
        _
      $region10: #{tpu_custom_call.1} parent=5 // pred_check_branch
        %101 = sbr.rel (%p98) target = $region12
      $region11: #{tpu_custom_call.1} parent=5 // pred_region
        %s102 = ssub.s32 %s15, 1
        // Predicated region
        $region13: #{tpu_custom_call.1} parent=11 // pred_check
          %p103 = pneg %p62
        $region14: #{tpu_custom_call.1} parent=11 // pred_check_branch
          %105 = sbr.rel (%p103) target = $region16
        $region15: #{tpu_custom_call.1} parent=11 // pred_region
          %s107 = ssub.s32 128, 128
          %108 = vsyncadd [#allocation6], %s107
          %s110 = sshll.u32 [#allocation5], 4
          %s111 = int_to_ptr.vmem [resolvable:$true] %s110
          %113 = dma.hbm_to_vmem [thread:$0]  %s1, 128, %s111, [#allocation6]
        $region16: #{tpu_custom_call.1} parent=11 // pred_fallthru
          _
      $region12: #{tpu_custom_call.1} parent=5 // pred_fallthru
        _
      %p114 = scmp.lt.s32.totalorder %s15, 2
      // Predicated region
      $region17: #{tpu_custom_call.1} parent=5 // pred_check
        %p115 = pneg %p114
      $region18: #{tpu_custom_call.1} parent=5 // pred_check_branch
        %117 = sbr.rel (%p115) target = $region20
      $region19: #{tpu_custom_call.1} parent=5 // pred_region
        // Predicated region
        $region21: #{tpu_custom_call.1} parent=19 // pred_check
          %p118 = pneg %p35
        $region22: #{tpu_custom_call.1} parent=19 // pred_check_branch
          %120 = sbr.rel (%p118) target = $region24
        $region23: #{tpu_custom_call.1} parent=19 // pred_region
          %s121 = sand.u32 %s25, 1
          %s122 = scalar_lea.sflag [#allocation3], %s121
          %s123 = sand.u32 %s25, 1
          %s124 = smul.addr %s123, 8
          %s125 = scalar_lea.vmem [#allocation2], %s124
          %s127 = ssub.s32 128, 128
          %128 = vsyncadd %s122, %s127
          %s129 = smul.addr %s15, 128
          %s130 = scalar_lea.hbm %s0, %s129
          %s132 = sshll.u32 %s125, 4
          %s133 = int_to_ptr.vmem [resolvable:$true] %s132
          %135 = dma.hbm_to_vmem [thread:$0]  %s130, 128, %s133, %s122
        $region24: #{tpu_custom_call.1} parent=19 // pred_fallthru
          _
      $region20: #{tpu_custom_call.1} parent=5 // pred_fallthru
        _
      %p136 = scmp.le.s32.totalorder 1, %s15
      %p137 = scmp.lt.s32.totalorder %s15, 3
      %p138 = pnand %p136, %p137
      %p139 = pneg %p138
      // Predicated region
      $region25: #{tpu_custom_call.1} parent=5 // pred_check
        _
      $region26: #{tpu_custom_call.1} parent=5 // pred_check_branch
        %141 = sbr.rel (%p138) target = $region28
      $region27: #{tpu_custom_call.1} parent=5 // pred_region
        %s142 = ssub.s32 %s15, 1
        %s143 = sand.u32 %s28, 1
        %s144 = scalar_lea.sflag [#allocation3], %s143
        %s145 = sand.u32 %s28, 1
        %s146 = smul.addr %s145, 8
        %s147 = scalar_lea.vmem [#allocation2], %s146
        // Predicated region
        $region29: #{tpu_custom_call.1} parent=27 // pred_check
          %p148 = pneg %p41
        $region30: #{tpu_custom_call.1} parent=27 // pred_check_branch
          %150 = sbr.rel (%p148) target = $region32
        $region31: #{tpu_custom_call.1} parent=27 // pred_region
          %151 = dma.done %s144, 128
        $region32: #{tpu_custom_call.1} parent=27 // pred_fallthru
          _
        // Predicated region
        $region33: #{tpu_custom_call.1} parent=27 // pred_check
          %p152 = pneg %p62
        $region34: #{tpu_custom_call.1} parent=27 // pred_check_branch
          %154 = sbr.rel (%p152) target = $region36
        $region35: #{tpu_custom_call.1} parent=27 // pred_region
          %155 = dma.done [#allocation6], 128
        $region36: #{tpu_custom_call.1} parent=27 // pred_fallthru
          _
        %s156 = sand.u32 %s28, 1
        %s157 = scalar_lea.sflag [#allocation3], %s156
        %s158 = sand.u32 %s28, 1
        %s159 = smul.addr %s158, 8
        %s160 = scalar_lea.vmem [#allocation2], %s159
        %p161 = pneg %p41
        %p162 = pneg %p38
        %p163 = pneg %p62
        %p164 = pneg %p59
        %p165 = pneg %p88
        %p166 = pneg %p85
        %s167 = sand.u32 %s75, 1
        %s168 = scalar_lea.sflag [#allocation4], %s167
        %s169 = sand.u32 %s75, 1
        %s170 = smul.addr %s169, 8
        %s171 = scalar_lea.vmem [#allocation7], %s170
        %v172 = vld [vmem:[%s147] sm:$0xff]
        %v173 = vld [vmem:[#allocation5] sm:$0xff]
        %v174 = vadd.f32 %v172, %v173
        %175 = vst [vmem:[%s171] sm:$0xff] %v174
        %s176 = sand.u32 %s75, 1
        %s177 = scalar_lea.sflag [#allocation4], %s176
        %s178 = sand.u32 %s75, 1
        %s179 = smul.addr %s178, 8
        %s180 = scalar_lea.vmem [#allocation7], %s179
        // Predicated region
        $region37: #{tpu_custom_call.1} parent=27 // pred_check
          %p181 = pneg %p85
        $region38: #{tpu_custom_call.1} parent=27 // pred_check_branch
          %183 = sbr.rel (%p181) target = $region40
        $region39: #{tpu_custom_call.1} parent=27 // pred_region
          %s185 = ssub.s32 128, 128
          %186 = vsyncadd %s177, %s185
          %s187 = smul.addr %s20, 128
          %s188 = scalar_lea.hbm %s2, %s187
          %s190 = sshll.u32 %s180, 4
          %s191 = int_to_ptr.vmem [resolvable:$true] %s190
          %193 = dma.vmem_to_hbm [thread:$0]  %s191, 128, %s188, %s177
        $region40: #{tpu_custom_call.1} parent=27 // pred_fallthru
          _
      $region28: #{tpu_custom_call.1} parent=5 // pred_fallthru
        _
      %p194 = scmp.le.s32.totalorder 2, %s15
      // Predicated region
      $region41: #{tpu_custom_call.1} parent=5 // pred_check
        %p195 = pneg %p194
      $region42: #{tpu_custom_call.1} parent=5 // pred_check_branch
        %197 = sbr.rel (%p195) target = $region44
      $region43: #{tpu_custom_call.1} parent=5 // pred_region
        %s198 = ssub.s32 %s15, 2
        // Predicated region
        $region45: #{tpu_custom_call.1} parent=43 // pred_check
          %p199 = pneg %p91
        $region46: #{tpu_custom_call.1} parent=43 // pred_check_branch
          %201 = sbr.rel (%p199) target = $region48
        $region47: #{tpu_custom_call.1} parent=43 // pred_region
          %s202 = sand.u32 %s76, 1
          %s203 = scalar_lea.sflag [#allocation4], %s202
          %s204 = sand.u32 %s76, 1
          %s205 = smul.addr %s204, 8
          %s206 = scalar_lea.vmem [#allocation7], %s205
          %207 = dma.done %s203, 128
        $region48: #{tpu_custom_call.1} parent=43 // pred_fallthru
          _
      $region44: #{tpu_custom_call.1} parent=5 // pred_fallthru
        _
    $region6: #{tpu_custom_call.1} parent=1 // loop_footer
      %s19 = sadd.s32 1, %s15
    $region7: #{tpu_custom_call.1} parent=1 // loop_footer_branch
      %14 = sbr.rel target = $region3
    $region8: #{tpu_custom_call.1} parent=1 // loop_exit
      _
    %208 = vsyncpa [#allocation3], 1
    %s209 = scalar_lea.sflag [#allocation3], 1
    %210 = vsyncpa %s209, 1
    %211 = vsyncpa [#allocation6], 1
    %212 = vsyncpa [#allocation4], 1
    %s213 = scalar_lea.sflag [#allocation4], 1
    %214 = vsyncpa %s213, 1

// kernel: adapter_forward.1
$region0: #{adapter_forward.1}
  #allocation0 [shape = 'u32[]', space=smem, size = 0x4, offset = 0x4, fixed_abs, tag = 'smem constant byte address 0x4 - core index']
  #allocation1 [shape = 'u32[144,128]{1,0:T(1,128)}', space=vmem, size = 0x12000, scoped, tag = 'internal scratch']
  #allocation2 [shape = 'f32[1,1]{1,0:T(1,128)S(6)}', space=smem, size = 0x200, scoped, tag = 'scoped memory for adapter_forward.1']
  %s0 = inlined_call_operand.vmem [shape: f32[16,32], index: 0, kind: input, shape index: {}]
  %s1 = inlined_call_operand.vmem [shape: f32[32,16], index: 1, kind: input, shape index: {}]
  %s2 = inlined_call_operand.vmem [shape: f32[1,16], index: 2, kind: input, shape index: {}]
  %s3 = inlined_call_operand.vmem [shape: f32[16,32], index: 3, kind: input, shape index: {}]
  %s4 = inlined_call_operand.vmem [shape: f32[1,32], index: 4, kind: input, shape index: {}]
  %s5 = inlined_call_operand.<no memory space> [shape: f32[1,1], index: 5, kind: input, shape index: {}]
  %s6 = inlined_call_operand.hbm [shape: f32[16,32], index: 6, kind: output, shape index: {}]
  %s7 = sld [smem:[#allocation0]]
  $region57: #{adapter_forward.1} parent=0
    _
  %s9 = ssub.s32 1, %s7
  %s10 = scalar_select 0, %s9, %s7
  %11 = sst [smem:[#allocation2]] %s5
  $region1: #{adapter_forward.1} parent=0
    #allocation3 [shape = 'u8[8192]{0}', space=vmem, size = 0x2000, scoped, tag = 'output window, operand 0']
    #allocation4 [shape = 's32[2]{0}', space=sflag, size = 0x8, scoped, tag = 'scoped memory for adapter_forward.1']
    %12 = vsyncpa [#allocation4], 0
    %s13 = scalar_lea.sflag [#allocation4], 1
    %14 = vsyncpa %s13, 0
    loop: start=0, step=1, limit=4
    $region2: #{adapter_forward.1} parent=1 // loop_pre_header
      _
    $region3: #{adapter_forward.1} parent=1 // loop_header
      %s16 = sphi 0, %s20
      %p17 = scmp.ge.s32.totalorder %s16, 4
      %s26 = sphi 0, %s28
      %s29 = sphi 0, %s26
      %s30 = sphi 0, %s29
      %s46 = sphi 0, %s30
      %s50 = sphi 0, %s50
      %s52 = sphi 0, %s50
      %s53 = sphi 0, %s52
      %s67 = sphi 0, %s53
      %s71 = sphi 0, %s71
      %s73 = sphi 0, %s71
      %s74 = sphi 0, %s73
      %s88 = sphi 0, %s74
      %s92 = sphi 0, %s92
      %s94 = sphi 0, %s92
      %s95 = sphi 0, %s94
      %s109 = sphi 0, %s95
      %s113 = sphi 0, %s113
      %s115 = sphi 0, %s113
      %s116 = sphi 0, %s115
      %s130 = sphi 0, %s116
      %s134 = sphi 0, %s134
      %s136 = sphi 0, %s134
      %s137 = sphi 0, %s136
      %s151 = sphi 0, %s137
      %s157 = sphi 0, %s159
      %s160 = sphi 0, %s157
      %s161 = sphi 0, %s160
      %s177 = sphi 0, %s161
    $region4: #{adapter_forward.1} parent=1 // loop_header_branch
      %19 = sbr.rel (%p17) target = $region8
    $region5: #{adapter_forward.1} parent=1 // loop_body
      %s21 = ssub.s32 %s16, 1
      %s22 = ssub.s32 %s16, 2
      %s23 = sadd.s32 %s16, 1
      %s24 = ssub.s32 %s16, %s23
      %p25 = scmp.eq.s32.totalorder %s24, 0
      %s27 = sadd.s32 %s26, 1
      %s28 = scalar_select %p25, %s26, %s27
      %p31 = pneg %p25
      %p32 = scmp.eq.s32.totalorder %s16, 1
      %p33 = por %p31, %p32
      %p34 = scmp.ne.s32.totalorder %s26, %s29
      %p35 = scmp.eq.s32.totalorder %s16, 0
      %p36 = por %p34, %p35
      %p37 = scmp.ne.s32.totalorder %s26, %s29
      %p38 = scmp.eq.s32.totalorder %s21, 1
      %p39 = por %p37, %p38
      %p40 = scmp.ne.s32.totalorder %s29, %s30
      %p41 = scmp.eq.s32.totalorder %s21, 0
      %p42 = por %p40, %p41
      %p43 = scmp.ne.s32.totalorder %s29, %s30
      %p44 = scmp.eq.s32.totalorder %s22, 1
      %p45 = por %p43, %p44
      %p47 = scmp.ne.s32.totalorder %s30, %s46
      %p48 = scmp.eq.s32.totalorder %s22, 0
      %p49 = por %p47, %p48
      %s51 = sadd.s32 %s50, 1
      %p54 = scmp.eq.s32.totalorder %s16, 1
      %p55 = scmp.ne.s32.totalorder %s50, %s52
      %p56 = scmp.eq.s32.totalorder %s16, 0
      %p57 = por %p55, %p56
      %p58 = scmp.ne.s32.totalorder %s50, %s52
      %p59 = scmp.eq.s32.totalorder %s21, 1
      %p60 = por %p58, %p59
      %p61 = scmp.ne.s32.totalorder %s52, %s53
      %p62 = scmp.eq.s32.totalorder %s21, 0
      %p63 = por %p61, %p62
      %p64 = scmp.ne.s32.totalorder %s52, %s53
      %p65 = scmp.eq.s32.totalorder %s22, 1
      %p66 = por %p64, %p65
      %p68 = scmp.ne.s32.totalorder %s53, %s67
      %p69 = scmp.eq.s32.totalorder %s22, 0
      %p70 = por %p68, %p69
      %s72 = sadd.s32 %s71, 1
      %p75 = scmp.eq.s32.totalorder %s16, 1
      %p76 = scmp.ne.s32.totalorder %s71, %s73
      %p77 = scmp.eq.s32.totalorder %s16, 0
      %p78 = por %p76, %p77
      %p79 = scmp.ne.s32.totalorder %s71, %s73
      %p80 = scmp.eq.s32.totalorder %s21, 1
      %p81 = por %p79, %p80
      %p82 = scmp.ne.s32.totalorder %s73, %s74
      %p83 = scmp.eq.s32.totalorder %s21, 0
      %p84 = por %p82, %p83
      %p85 = scmp.ne.s32.totalorder %s73, %s74
      %p86 = scmp.eq.s32.totalorder %s22, 1
      %p87 = por %p85, %p86
      %p89 = scmp.ne.s32.totalorder %s74, %s88
      %p90 = scmp.eq.s32.totalorder %s22, 0
      %p91 = por %p89, %p90
      %s93 = sadd.s32 %s92, 1
      %p96 = scmp.eq.s32.totalorder %s16, 1
      %p97 = scmp.ne.s32.totalorder %s92, %s94
      %p98 = scmp.eq.s32.totalorder %s16, 0
      %p99 = por %p97, %p98
      %p100 = scmp.ne.s32.totalorder %s92, %s94
      %p101 = scmp.eq.s32.totalorder %s21, 1
      %p102 = por %p100, %p101
      %p103 = scmp.ne.s32.totalorder %s94, %s95
      %p104 = scmp.eq.s32.totalorder %s21, 0
      %p105 = por %p103, %p104
      %p106 = scmp.ne.s32.totalorder %s94, %s95
      %p107 = scmp.eq.s32.totalorder %s22, 1
      %p108 = por %p106, %p107
      %p110 = scmp.ne.s32.totalorder %s95, %s109
      %p111 = scmp.eq.s32.totalorder %s22, 0
      %p112 = por %p110, %p111
      %s114 = sadd.s32 %s113, 1
      %p117 = scmp.eq.s32.totalorder %s16, 1
      %p118 = scmp.ne.s32.totalorder %s113, %s115
      %p119 = scmp.eq.s32.totalorder %s16, 0
      %p120 = por %p118, %p119
      %p121 = scmp.ne.s32.totalorder %s113, %s115
      %p122 = scmp.eq.s32.totalorder %s21, 1
      %p123 = por %p121, %p122
      %p124 = scmp.ne.s32.totalorder %s115, %s116
      %p125 = scmp.eq.s32.totalorder %s21, 0
      %p126 = por %p124, %p125
      %p127 = scmp.ne.s32.totalorder %s115, %s116
      %p128 = scmp.eq.s32.totalorder %s22, 1
      %p129 = por %p127, %p128
      %p131 = scmp.ne.s32.totalorder %s116, %s130
      %p132 = scmp.eq.s32.totalorder %s22, 0
      %p133 = por %p131, %p132
      %s135 = sadd.s32 %s134, 1
      %p138 = scmp.eq.s32.totalorder %s16, 1
      %p139 = scmp.ne.s32.totalorder %s134, %s136
      %p140 = scmp.eq.s32.totalorder %s16, 0
      %p141 = por %p139, %p140
      %p142 = scmp.ne.s32.totalorder %s134, %s136
      %p143 = scmp.eq.s32.totalorder %s21, 1
      %p144 = por %p142, %p143
      %p145 = scmp.ne.s32.totalorder %s136, %s137
      %p146 = scmp.eq.s32.totalorder %s21, 0
      %p147 = por %p145, %p146
      %p148 = scmp.ne.s32.totalorder %s136, %s137
      %p149 = scmp.eq.s32.totalorder %s22, 1
      %p150 = por %p148, %p149
      %p152 = scmp.ne.s32.totalorder %s137, %s151
      %p153 = scmp.eq.s32.totalorder %s22, 0
      %p154 = por %p152, %p153
      %s155 = ssub.s32 %s16, %s23
      %p156 = scmp.eq.s32.totalorder %s155, 0
      %s158 = sadd.s32 %s157, 1
      %s159 = scalar_select %p156, %s157, %s158
      %p162 = pneg %p156
      %p163 = scmp.eq.s32.totalorder %s16, 1
      %p164 = por %p162, %p163
      %p165 = scmp.ne.s32.totalorder %s157, %s160
      %p166 = scmp.eq.s32.totalorder %s16, 0
      %p167 = por %p165, %p166
      %p168 = scmp.ne.s32.totalorder %s157, %s160
      %p169 = scmp.eq.s32.totalorder %s21, 1
      %p170 = por %p168, %p169
      %p171 = scmp.ne.s32.totalorder %s160, %s161
      %p172 = scmp.eq.s32.totalorder %s21, 0
      %p173 = por %p171, %p172
      %p174 = scmp.ne.s32.totalorder %s160, %s161
      %p175 = scmp.eq.s32.totalorder %s22, 1
      %p176 = por %p174, %p175
      %p178 = scmp.ne.s32.totalorder %s161, %s177
      %p179 = scmp.eq.s32.totalorder %s22, 0
      %p180 = por %p178, %p179
      %p181 = scmp.le.s32.totalorder 1, %s16
      %p182 = scmp.lt.s32.totalorder %s16, 3
      %p183 = pnand %p181, %p182
      %p184 = pneg %p183
      // Predicated region
      $region9: #{adapter_forward.1} parent=5 // pred_check
        _
      $region10: #{adapter_forward.1} parent=5 // pred_check_branch
        %186 = sbr.rel (%p183) target = $region12
      $region11: #{adapter_forward.1} parent=5 // pred_region
        %s187 = ssub.s32 %s16, 1
        // Predicated region
        $region13: #{adapter_forward.1} parent=11 // pred_check
          %p188 = pneg %p63
        $region14: #{adapter_forward.1} parent=11 // pred_check_branch
          %190 = sbr.rel (%p188) target = $region16
        $region15: #{adapter_forward.1} parent=11 // pred_region
          _
        $region16: #{adapter_forward.1} parent=11 // pred_fallthru
          _
        // Predicated region
        $region17: #{adapter_forward.1} parent=11 // pred_check
          %p191 = pneg %p84
        $region18: #{adapter_forward.1} parent=11 // pred_check_branch
          %193 = sbr.rel (%p191) target = $region20
        $region19: #{adapter_forward.1} parent=11 // pred_region
          _
        $region20: #{adapter_forward.1} parent=11 // pred_fallthru
          _
        // Predicated region
        $region21: #{adapter_forward.1} parent=11 // pred_check
          %p194 = pneg %p105
        $region22: #{adapter_forward.1} parent=11 // pred_check_branch
          %196 = sbr.rel (%p194) target = $region24
        $region23: #{adapter_forward.1} parent=11 // pred_region
          _
        $region24: #{adapter_forward.1} parent=11 // pred_fallthru
          _
        // Predicated region
        $region25: #{adapter_forward.1} parent=11 // pred_check
          %p197 = pneg %p126
        $region26: #{adapter_forward.1} parent=11 // pred_check_branch
          %199 = sbr.rel (%p197) target = $region28
        $region27: #{adapter_forward.1} parent=11 // pred_region
          _
        $region28: #{adapter_forward.1} parent=11 // pred_fallthru
          _
        // Predicated region
        $region29: #{adapter_forward.1} parent=11 // pred_check
          %p200 = pneg %p147
        $region30: #{adapter_forward.1} parent=11 // pred_check_branch
          %202 = sbr.rel (%p200) target = $region32
        $region31: #{adapter_forward.1} parent=11 // pred_region
          _
        $region32: #{adapter_forward.1} parent=11 // pred_fallthru
          _
      $region12: #{adapter_forward.1} parent=5 // pred_fallthru
        _
      %p203 = scmp.lt.s32.totalorder %s16, 2
      // Predicated region
      $region33: #{adapter_forward.1} parent=5 // pred_check
        %p204 = pneg %p203
      $region34: #{adapter_forward.1} parent=5 // pred_check_branch
        %206 = sbr.rel (%p204) target = $region36
      $region35: #{adapter_forward.1} parent=5 // pred_region
        // Predicated region
        $region37: #{adapter_forward.1} parent=35 // pred_check
          %p207 = pneg %p36
        $region38: #{adapter_forward.1} parent=35 // pred_check_branch
          %209 = sbr.rel (%p207) target = $region40
        $region39: #{adapter_forward.1} parent=35 // pred_region
          %p210 = scmp.lt.s32.totalorder %s16, 1
          %s211 = scalar_select %p210, %s16, 1
          %s212 = smul.addr %s211, 8
          %s213 = scalar_lea.vmem %s0, %s212
        $region40: #{adapter_forward.1} parent=35 // pred_fallthru
          _
      $region36: #{adapter_forward.1} parent=5 // pred_fallthru
        _
      %p214 = scmp.le.s32.totalorder 1, %s16
      %p215 = scmp.lt.s32.totalorder %s16, 3
      %p216 = pnand %p214, %p215
      %p217 = pneg %p216
      // Predicated region
      $region41: #{adapter_forward.1} parent=5 // pred_check
        _
      $region42: #{adapter_forward.1} parent=5 // pred_check_branch
        %219 = sbr.rel (%p216) target = $region44
      $region43: #{adapter_forward.1} parent=5 // pred_region
        %s220 = ssub.s32 %s16, 1
        %p221 = scmp.lt.s32.totalorder %s21, 1
        %s222 = scalar_select %p221, %s21, 1
        %s223 = smul.addr %s222, 8
        %s224 = scalar_lea.vmem %s0, %s223
        %p225 = pneg %p42
        %p226 = pneg %p39
        %p227 = pneg %p63
        %p228 = pneg %p60
        %p229 = pneg %p84
        %p230 = pneg %p81
        %p231 = pneg %p105
        %p232 = pneg %p102
        %p233 = pneg %p126
        %p234 = pneg %p123
        %p235 = pneg %p147
        %p236 = pneg %p144
        %p237 = pneg %p173
        %p238 = pneg %p170
        %s239 = sand.u32 %s160, 1
        %s240 = scalar_lea.sflag [#allocation4], %s239
        %s241 = sand.u32 %s160, 1
        %s242 = smul.addr %s241, 8
        %s243 = scalar_lea.vmem [#allocation3], %s242
        %p244 = scmp.lt.s32.totalorder %s21, 1
        %s245 = scalar_select %p244, %s21, 1
        %s246 = smul.addr %s245, 8
        %s247 = scalar_lea.vmem %s0, %s246
        %v248 = vld [vmem:[%s247] sm:$0xff]
        %v249 = vld [vmem:[%s1] sm:$0xff]
        %v250 = vld [vmem:[%s1 + $0x8] sm:$0xff]
        %v251 = vld [vmem:[%s1 + $0x10] sm:$0xff]
        %v252 = vld [vmem:[%s1 + $0x18] sm:$0xff]
        %v253 = vld [vmem:[%s2] sm:$0x1]
        %v255 = vlaneseq
        %v256 = vshrl.u32 %v255, 7
        %v257 = vsub.s32 0, %v256
        %v258 = vrot.slane %v253, %v257
        %vm260 = vcmask 261120
        %v262 = vsel %vm260, %v248, 0
        %264 = vmatprep.subr.mxu0 0.0
        %265 = vmatpush1.msra.mxu0 0.0
        %266 = vmatprep.subr.mxu0 0.0
        %267 = vmatpush1.msra.mxu0 0.0
        %268 = vmatprep.subr.mxu0 0.0
        %269 = vmatpush1.msra.mxu0 0.0
        %270 = vmatprep.subr.mxu0 0.0
        %271 = vmatpush1.msra.mxu0 0.0
        %272 = vmatprep.subr.mxu0 0.0
        %273 = vmatpush1.msra.mxu0 0.0
        %274 = vmatprep.subr.mxu0 0.0
        %275 = vmatpush1.msra.mxu0 0.0
        %276 = vmatprep.subr.mxu0 0.0
        %277 = vmatpush1.msra.mxu0 0.0
        %278 = vmatprep.subr.mxu0 0.0
        %279 = vmatpush1.msra.mxu0 0.0
        %280 = vmatprep.subr.mxu0 0.0
        %281 = vmatpush1.msra.mxu0 0.0
        %282 = vmatprep.subr.mxu0 0.0
        %283 = vmatpush1.msra.mxu0 0.0
        %284 = vmatprep.subr.mxu0 0.0
        %285 = vmatpush1.msra.mxu0 0.0
        %286 = vmatprep.subr.mxu0 0.0
        %287 = vmatpush1.msra.mxu0 0.0
        %288 = vmatprep.subr.mxu0 0.0
        %289 = vmatpush1.msra.mxu0 %v252
        %290 = vmatprep.subr.mxu0 0.0
        %291 = vmatpush1.msra.mxu0 %v251
        %292 = vmatprep.subr.mxu0 0.0
        %293 = vmatpush1.msra.mxu0 %v250
        %294 = vmatprep.subr.mxu0 0.0
        %295 = vmatpush1.msra.mxu0 %v249
        %296 = vmatprep.subr.mxu0 0.0
        %297 = vmatpush2.msra.mxu0 0.0
        %298 = vmatprep.subr.mxu0 0.0
        %299 = vmatpush2.msra.mxu0 0.0
        %300 = vmatprep.subr.mxu0 0.0
        %301 = vmatpush2.msra.mxu0 0.0
        %302 = vmatprep.subr.mxu0 0.0
        %303 = vmatpush2.msra.mxu0 0.0
        %304 = vmatprep.subr.mxu0 0.0
        %305 = vmatpush2.msra.mxu0 0.0
        %306 = vmatprep.subr.mxu0 0.0
        %307 = vmatpush2.msra.mxu0 0.0
        %308 = vmatprep.subr.mxu0 0.0
        %309 = vmatpush2.msra.mxu0 0.0
        %310 = vmatprep.subr.mxu0 0.0
        %311 = vmatpush2.msra.mxu0 0.0
        %312 = vmatprep.subr.mxu0 0.0
        %313 = vmatpush2.msra.mxu0 0.0
        %314 = vmatprep.subr.mxu0 0.0
        %315 = vmatpush2.msra.mxu0 0.0
        %316 = vmatprep.subr.mxu0 0.0
        %317 = vmatpush2.msra.mxu0 0.0
        %318 = vmatprep.subr.mxu0 0.0
        %319 = vmatpush2.msra.mxu0 0.0
        %320 = vmatprep.subr.mxu0 0.0
        %321 = vmatpush2.msra.mxu0 0.0
        %322 = vmatprep.subr.mxu0 0.0
        %323 = vmatpush2.msra.mxu0 0.0
        %324 = vmatprep.subr.mxu0 0.0
        %325 = vmatpush2.msra.mxu0 0.0
        %326 = vmatprep.subr.mxu0 0.0
        %327 = vmatpush2.msra.mxu0 0.0
        %328 = vmatprep.mubr.f32.mxu0 0.0
        %329 = vmatmul.mubr.f32.gmra.mxu0 %v262
        %v330 = vpop.f32.mrf.mxu0
        %v331 = vadd.f32 %v258, %v330
        %v332 = vpop.f32.mrf.mxu0
        %333 = vdwg.mxu0
        %v334 = vmax.f32 %v331, 0.0
        %v335 = vld [vmem:[%s3] sm:$0xff]
        %v336 = vld [vmem:[%s3 + $0x8] sm:$0xff]
        %v337 = vld [vmem:[%s4] sm:$0x1]
        %v339 = vlaneseq
        %v340 = vshrl.u32 %v339, 7
        %v341 = vsub.s32 0, %v340
        %v342 = vrot.slane %v337, %v341
        %vm344 = vcmask 130048
        %v346 = vsel %vm344, %v334, 0
        %348 = vmatprep.subr.mxu0 0.0
        %349 = vmatpush1.msra.mxu0 0.0
        %350 = vmatprep.subr.mxu0 0.0
        %351 = vmatpush1.msra.mxu0 0.0
        %352 = vmatprep.subr.mxu0 0.0
        %353 = vmatpush1.msra.mxu0 0.0
        %354 = vmatprep.subr.mxu0 0.0
        %355 = vmatpush1.msra.mxu0 0.0
        %356 = vmatprep.subr.mxu0 0.0
        %357 = vmatpush1.msra.mxu0 0.0
        %358 = vmatprep.subr.mxu0 0.0
        %359 = vmatpush1.msra.mxu0 0.0
        %360 = vmatprep.subr.mxu0 0.0
        %361 = vmatpush1.msra.mxu0 0.0
        %362 = vmatprep.subr.mxu0 0.0
        %363 = vmatpush1.msra.mxu0 0.0
        %364 = vmatprep.subr.mxu0 0.0
        %365 = vmatpush1.msra.mxu0 0.0
        %366 = vmatprep.subr.mxu0 0.0
        %367 = vmatpush1.msra.mxu0 0.0
        %368 = vmatprep.subr.mxu0 0.0
        %369 = vmatpush1.msra.mxu0 0.0
        %370 = vmatprep.subr.mxu0 0.0
        %371 = vmatpush1.msra.mxu0 0.0
        %372 = vmatprep.subr.mxu0 0.0
        %373 = vmatpush1.msra.mxu0 0.0
        %374 = vmatprep.subr.mxu0 0.0
        %375 = vmatpush1.msra.mxu0 0.0
        %376 = vmatprep.subr.mxu0 0.0
        %377 = vmatpush1.msra.mxu0 %v336
        %378 = vmatprep.subr.mxu0 0.0
        %379 = vmatpush1.msra.mxu0 %v335
        %380 = vmatprep.subr.mxu0 0.0
        %381 = vmatpush2.msra.mxu0 0.0
        %382 = vmatprep.subr.mxu0 0.0
        %383 = vmatpush2.msra.mxu0 0.0
        %384 = vmatprep.subr.mxu0 0.0
        %385 = vmatpush2.msra.mxu0 0.0
        %386 = vmatprep.subr.mxu0 0.0
        %387 = vmatpush2.msra.mxu0 0.0
        %388 = vmatprep.subr.mxu0 0.0
        %389 = vmatpush2.msra.mxu0 0.0
        %390 = vmatprep.subr.mxu0 0.0
        %391 = vmatpush2.msra.mxu0 0.0
        %392 = vmatprep.subr.mxu0 0.0
        %393 = vmatpush2.msra.mxu0 0.0
        %394 = vmatprep.subr.mxu0 0.0
        %395 = vmatpush2.msra.mxu0 0.0
        %396 = vmatprep.subr.mxu0 0.0
        %397 = vmatpush2.msra.mxu0 0.0
        %398 = vmatprep.subr.mxu0 0.0
        %399 = vmatpush2.msra.mxu0 0.0
        %400 = vmatprep.subr.mxu0 0.0
        %401 = vmatpush2.msra.mxu0 0.0
        %402 = vmatprep.subr.mxu0 0.0
        %403 = vmatpush2.msra.mxu0 0.0
        %404 = vmatprep.subr.mxu0 0.0
        %405 = vmatpush2.msra.mxu0 0.0
        %406 = vmatprep.subr.mxu0 0.0
        %407 = vmatpush2.msra.mxu0 0.0
        %408 = vmatprep.subr.mxu0 0.0
        %409 = vmatpush2.msra.mxu0 0.0
        %410 = vmatprep.subr.mxu0 0.0
        %411 = vmatpush2.msra.mxu0 0.0
        %412 = vmatprep.mubr.f32.mxu0 0.0
        %413 = vmatmul.mubr.f32.gmra.mxu0 %v346
        %v414 = vpop.f32.mrf.mxu0
        %v415 = vadd.f32 %v342, %v414
        %v416 = vpop.f32.mrf.mxu0
        %417 = vdwg.mxu0
        %s418 = sld [smem:[#allocation2]]
        %v419 = vstv %s418
        %v420 = vmul.f32 %v415, %v419
        %421 = vst.msk [vmem:[%s243] sm:$0xff] %vm260, %v420
        %s422 = sand.u32 %s160, 1
        %s423 = scalar_lea.sflag [#allocation4], %s422
        %s424 = sand.u32 %s160, 1
        %s425 = smul.addr %s424, 8
        %s426 = scalar_lea.vmem [#allocation3], %s425
        // Predicated region
        $region45: #{adapter_forward.1} parent=43 // pred_check
          %p427 = pneg %p170
        $region46: #{adapter_forward.1} parent=43 // pred_check_branch
          %429 = sbr.rel (%p427) target = $region48
        $region47: #{adapter_forward.1} parent=43 // pred_region
          %s431 = ssub.s32 128, 128
          %432 = vsyncadd %s423, %s431
          %s433 = smul.addr %s21, 128
          %s434 = scalar_lea.hbm %s6, %s433
          %s436 = sshll.u32 %s426, 4
          %s437 = int_to_ptr.vmem [resolvable:$true] %s436
          %439 = dma.vmem_to_hbm [thread:$0]  %s437, 128, %s434, %s423
        $region48: #{adapter_forward.1} parent=43 // pred_fallthru
          _
      $region44: #{adapter_forward.1} parent=5 // pred_fallthru
        _
      %p440 = scmp.le.s32.totalorder 2, %s16
      // Predicated region
      $region49: #{adapter_forward.1} parent=5 // pred_check
        %p441 = pneg %p440
      $region50: #{adapter_forward.1} parent=5 // pred_check_branch
        %443 = sbr.rel (%p441) target = $region52
      $region51: #{adapter_forward.1} parent=5 // pred_region
        %s444 = ssub.s32 %s16, 2
        // Predicated region
        $region53: #{adapter_forward.1} parent=51 // pred_check
          %p445 = pneg %p176
        $region54: #{adapter_forward.1} parent=51 // pred_check_branch
          %447 = sbr.rel (%p445) target = $region56
        $region55: #{adapter_forward.1} parent=51 // pred_region
          %s448 = sand.u32 %s161, 1
          %s449 = scalar_lea.sflag [#allocation4], %s448
          %s450 = sand.u32 %s161, 1
          %s451 = smul.addr %s450, 8
          %s452 = scalar_lea.vmem [#allocation3], %s451
          %453 = dma.done %s449, 128
        $region56: #{adapter_forward.1} parent=51 // pred_fallthru
          _
      $region52: #{adapter_forward.1} parent=5 // pred_fallthru
        _
    $region6: #{adapter_forward.1} parent=1 // loop_footer
      %s20 = sadd.s32 1, %s16
    $region7: #{adapter_forward.1} parent=1 // loop_footer_branch
      %15 = sbr.rel target = $region3
    $region8: #{adapter_forward.1} parent=1 // loop_exit
      _
    %454 = vsyncpa [#allocation4], 1
    %s455 = scalar_lea.sflag [#allocation4], 1
    %456 = vsyncpa %s455, 1

</llo_original>
